<compile_context>
chip_gen: v7x
topology: tpu7x:2x2x1
jax: 0.10.0
libtpu: 0.0.40
codegen_flags: <defaults>
</compile_context>

<pallas_src>
import functools

import jax
import jax.numpy as jnp
from jax import lax
from jax.experimental import pallas as pl
from jax.experimental.pallas import tpu as pltpu


_UNROLL = 8      # landmark loops shorter than this are fully unrolled
_MAX_TR = 512    # max sublane rows (of 128 lanes) per spatial tile (256 KiB/img)


def _heatmap_kernel(lmk_ref, rows_ref, cols_ref, out_ref, *,
                    H, W, N, TB, TR, half, BAND, use_band, use_skip):
    """Draws a (TB, TR, 128) lane-dense slab of heatmaps.

    lmk_ref : (TB, 2N) f32 SMEM block (landmarks of this batch tile).
    rows_ref: (TR, 128) f32 VMEM block — pixel row index for each slab entry.
    cols_ref: (TR, 128) f32 VMEM block — pixel col index for each slab entry.
    out_ref : (TB, TR, 128) f32 block; flat spatial index = row * W + col.
    """
    tstep = pl.program_id(1)
    flat0 = tstep * (TR * 128)

    lo = float(half)
    hi_r = float(W - 1 - half)       # coord 0 clamped against W (torch convention)
    hi_c = float(H - 1 - half)       # coord 1 clamped against H
    c_one = jnp.float32(1.0 + 1e-6)  # folded (1 + 1e-6) constant
    span = (2 * half + 1) * W        # flat-index extent of one patch

    def read_lmk(tb, n):
        # Scalar-unit work: clamp + truncate (coords >= 0 so trunc == .long()).
        r = jnp.clip(lmk_ref[tb, 2 * n], lo, hi_r)
        c = jnp.clip(lmk_ref[tb, 2 * n + 1], lo, hi_c)
        return r, c, r.astype(jnp.int32), c.astype(jnp.int32)

    def patch_value(rf, cf, r, c, ir, ic):
        # rf/cf hold exact small integers; bounds are exact integers as f32,
        # so the patch mask is exact.  No int32 index arrays are materialized.
        mask = ((rf >= (ir - half).astype(jnp.float32))
                & (rf <= (ir + half).astype(jnp.float32))
                & (cf >= (ic - half).astype(jnp.float32))
                & (cf <= (ic + half).astype(jnp.float32)))
        dr = rf - r
        dc = cf - c
        # Exact rsqrt (single EUP op); do NOT use an approximate rsqrt here.
        val = lax.rsqrt(dr * dr + dc * dc + c_one)
        return jnp.where(mask, val, jnp.float32(0.0))

    if not use_band:
        # ---- dense path: small tiles, full-tile work per landmark ----------
        rf = rows_ref[...]
        cf = cols_ref[...]
        for tb in range(TB):
            def contrib(n):
                r, c, ir, ic = read_lmk(tb, n)
                return patch_value(rf, cf, r, c, ir, ic)

            acc = contrib(0)                      # seed with landmark 0
            if N <= _UNROLL:
                for n in range(1, N):             # small N: static unroll
                    acc = jnp.maximum(acc, contrib(n))
            else:                                  # large N: bounded-unroll loop
                acc = lax.fori_loop(
                    1, N, lambda n, a: jnp.maximum(a, contrib(n)), acc,
                    unroll=_UNROLL)
            out_ref[tb] = acc
    else:
        # ---- band path: touch only the <= BAND sublane rows a patch covers -
        tile_end = flat0 + TR * 128
        for tb in range(TB):
            out_ref[tb] = jnp.zeros((TR, 128), jnp.float32)

            def update(n):
                r, c, ir, ic = read_lmk(tb, n)
                p_lo = (ir - half) * W            # patch flat-index range start

                def do_update():
                    l_lo = jnp.maximum(p_lo - flat0, 0)
                    start = jnp.minimum((l_lo // 128) // 8 * 8, TR - BAND)
                    start = pl.multiple_of(start, 8)   # valid: TR, BAND mult of 8
                    rf_b = rows_ref[pl.ds(start, BAND), :]
                    cf_b = cols_ref[pl.ds(start, BAND), :]
                    contrib = patch_value(rf_b, cf_b, r, c, ir, ic)
                    cur = out_ref[tb, pl.ds(start, BAND), :]
                    out_ref[tb, pl.ds(start, BAND), :] = jnp.maximum(cur, contrib)

                if use_skip:
                    # Scalar patch-vs-tile overlap test; skip all vector work
                    # when this landmark's patch cannot touch this tile.
                    hit = (p_lo < tile_end) & (p_lo + span > flat0)

                    @pl.when(hit)
                    def _():
                        do_update()
                else:
                    do_update()

            if N <= _UNROLL:
                for n in range(N):
                    update(n)
            else:
                def body(n, carry):
                    update(n)
                    return carry
                lax.fori_loop(0, N, body, 0, unroll=_UNROLL)


def heatmap_forward(landmark_batch, img_size, patch_size):
    """Pallas equivalent of HeatMap(img_size, patch_size)(landmark_batch)."""
    H = W = int(img_size)            # _pair(img_size) with a scalar img_size
    half = int(patch_size) // 2
    B = landmark_batch.shape[0]
    lmk = jnp.asarray(landmark_batch, jnp.float32).reshape(B, -1)   # (B, 2N)
    N = lmk.shape[1] // 2

    HW = H * W
    R = pl.cdiv(HW, 128)             # 128-lane rows per image

    # Batch tile: batch as hard as possible (no ">=2 steps" constraint here).
    TB = min(B, 8)
    B_pad = pl.cdiv(B, TB) * TB

    # Spatial tile.
    TR = min(R, _MAX_TR)
    # v7x: guarantee >= 2 total grid steps so both TensorCores get real work
    # (skip for tiny images where a split would only add padding work).
    if (B_pad // TB) * pl.cdiv(R, TR) < 2 and R >= 16:
        TR = pl.cdiv(pl.cdiv(R, 2), 8) * 8

    # Static per-landmark sublane band: patch rows + straddle + 8-align slack.
    span = (2 * half + 1) * W
    BAND = pl.cdiv(span, 128) + 1 + 7
    BAND = min(pl.cdiv(BAND, 8) * 8, TR)
    use_band = BAND < TR
    if use_band and TR % 8 != 0:     # keep band windows 8-aligned
        TR = pl.cdiv(TR, 8) * 8
    R_pad = pl.cdiv(R, TR) * TR
    use_skip = use_band and (R_pad // TR) > 1
    assert (not use_band) or (TR % 8 == 0 and BAND % 8 == 0)

    if B_pad != B:
        lmk = jnp.pad(lmk, ((0, B_pad - B), (0, 0)))

    # Precompute pixel row/col (as f32) once in the wrapper; padded positions
    # (flat index >= HW) get rows >= H and are masked to zero in the kernel.
    idx = jnp.arange(R_pad * 128, dtype=jnp.int32)
    rows_f = (idx // W).astype(jnp.float32).reshape(R_pad, 128)
    cols_f = (idx % W).astype(jnp.float32).reshape(R_pad, 128)

    kernel = functools.partial(
        _heatmap_kernel, H=H, W=W, N=N, TB=TB, TR=TR, half=half,
        BAND=BAND, use_band=use_band, use_skip=use_skip)

    out = pl.pallas_call(
        kernel,
        out_shape=jax.ShapeDtypeStruct((B_pad, R_pad, 128), jnp.float32),
        grid=(B_pad // TB, R_pad // TR),
        in_specs=[
            # Landmarks blocked per batch tile into SMEM (scales with B*N).
            pl.BlockSpec((TB, 2 * N), lambda s, t: (s, 0),
                         memory_space=pltpu.MemorySpace.SMEM),
            pl.BlockSpec((TR, 128), lambda s, t: (t, 0)),
            pl.BlockSpec((TR, 128), lambda s, t: (t, 0)),
        ],
        out_specs=pl.BlockSpec((TB, TR, 128), lambda s, t: (s, t, 0)),
        compiler_params=pltpu.CompilerParams(
            dimension_semantics=("parallel", "parallel")),
    )(lmk, rows_f, cols_f)

    if B_pad == B and R_pad * 128 == HW:
        return out.reshape(B, 1, H, W)
    return out.reshape(B_pad, R_pad * 128)[:B, :HW].reshape(B, 1, H, W)


def _heatmap_ref(landmark_batch, img_size, patch_size):
    """Pure-JAX reference replicating the PyTorch forward."""
    H = W = int(img_size)
    half = int(patch_size) // 2
    B = landmark_batch.shape[0]
    lmk = landmark_batch.reshape(B, -1, 2).astype(jnp.float32)
    r = jnp.clip(lmk[..., 0], half, W - 1 - half)     # coord 0 -> rows
    c = jnp.clip(lmk[..., 1], half, H - 1 - half)     # coord 1 -> cols
    ir = r.astype(jnp.int32)
    ic = c.astype(jnp.int32)
    rows = jnp.arange(H).reshape(1, 1, H, 1)
    cols = jnp.arange(W).reshape(1, 1, 1, W)
    mask = (jnp.abs(rows - ir[..., None, None]) <= half) & (
        jnp.abs(cols - ic[..., None, None]) <= half
    )
    d2 = (rows.astype(jnp.float32) - r[..., None, None]) ** 2 + (
        cols.astype(jnp.float32) - c[..., None, None]
    ) ** 2
    val = 1.0 / jnp.sqrt(1.0 + d2 + 1e-6)
    img = jnp.where(mask, val, 0.0)
    return jnp.max(img, axis=1, keepdims=True)  # (B, 1, H, W)


if __name__ == "__main__":
    key = jax.random.PRNGKey(0)
    k1, k2 = jax.random.split(key)

    # Config 1 (small): exercises the dense path (single tile, static unroll).
    B1, N1, img1, patch1 = 2, 4, 16, 3
    lmk1 = jax.random.uniform(k1, (B1, N1, 2), jnp.float32, 0.0, float(img1))
    out1 = jax.block_until_ready(heatmap_forward(lmk1, img1, patch1))
    ref1 = _heatmap_ref(lmk1, img1, patch1)
    assert out1.shape == (B1, 1, img1, img1), out1.shape
    assert out1.dtype == jnp.float32
    assert jnp.allclose(out1, ref1, atol=1e-5), float(jnp.max(jnp.abs(out1 - ref1)))

    # Config 2 (moderate): exercises the band window, the tile-skip pl.when,
    # the fori_loop landmark path, and the >=2-grid-step spatial split.
    B2, N2, img2, patch2 = 3, 10, 128, 5
    lmk2 = jax.random.uniform(k2, (B2, N2, 2), jnp.float32, 0.0, float(img2))
    out2 = jax.block_until_ready(heatmap_forward(lmk2, img2, patch2))
    ref2 = _heatmap_ref(lmk2, img2, patch2)
    assert out2.shape == (B2, 1, img2, img2), out2.shape
    assert out2.dtype == jnp.float32
    assert jnp.allclose(out2, ref2, atol=1e-5), float(jnp.max(jnp.abs(out2 - ref2)))

    print("KERNEL_OK")
</pallas_src>

<mosaic_0001>
module attributes {stable_mosaic.version = 11 : i64} {
  func.func @_heatmap_kernel(%arg0: i32, %arg1: i32, %arg2: memref<2x8xf32, #tpu.memory_space<smem>>, %arg3: memref<2x128xf32, #tpu.memory_space<vmem>>, %arg4: memref<2x128xf32, #tpu.memory_space<vmem>>, %arg5: memref<2x2x128xf32, #tpu.memory_space<vmem>>) attributes {dimension_semantics = [#tpu.dimension_semantics<parallel>, #tpu.dimension_semantics<parallel>], iteration_bounds = array<i64: 1, 1>, scalar_prefetch = 0 : i64, scratch_operands = 0 : i64, tpu.core_type = #tpu.core_type<tc>, window_params = [{transform_indices = @transform_0, window_bounds = array<i64: 2, 8>}, {transform_indices = @transform_1, window_bounds = array<i64: 2, 128>}, {transform_indices = @transform_2, window_bounds = array<i64: 2, 128>}, {transform_indices = @transform_3, window_bounds = array<i64: 2, 2, 128>}]} {
    %c0 = arith.constant 0 : index
    %c0_0 = arith.constant 0 : index
    %0 = vector.load %arg3[%c0, %c0_0] : memref<2x128xf32, #tpu.memory_space<vmem>>, vector<2x128xf32>
    %c0_1 = arith.constant 0 : index
    %c0_2 = arith.constant 0 : index
    %1 = vector.load %arg4[%c0_1, %c0_2] : memref<2x128xf32, #tpu.memory_space<vmem>>, vector<2x128xf32>
    %c0_3 = arith.constant 0 : index
    %c0_4 = arith.constant 0 : index
    %2 = memref.load %arg2[%c0_3, %c0_4] : memref<2x8xf32, #tpu.memory_space<smem>>
    %cst = arith.constant 1.000000e+00 : f32
    %cst_5 = arith.constant 1.400000e+01 : f32
    %3 = arith.maximumf %cst, %2 : f32
    %4 = arith.minimumf %cst_5, %3 : f32
    %c0_6 = arith.constant 0 : index
    %c1 = arith.constant 1 : index
    %5 = memref.load %arg2[%c0_6, %c1] : memref<2x8xf32, #tpu.memory_space<smem>>
    %cst_7 = arith.constant 1.000000e+00 : f32
    %cst_8 = arith.constant 1.400000e+01 : f32
    %6 = arith.maximumf %cst_7, %5 : f32
    %7 = arith.minimumf %cst_8, %6 : f32
    %8 = arith.fptosi %4 : f32 to i32
    %9 = arith.fptosi %7 : f32 to i32
    %c1_i32 = arith.constant 1 : i32
    %10 = arith.subi %8, %c1_i32 : i32
    %11 = arith.sitofp %10 : i32 to f32
    %12 = vector.broadcast %11 : f32 to vector<2x128xf32>
    %13 = arith.cmpf oge, %0, %12 : vector<2x128xf32>
    %c1_i32_9 = arith.constant 1 : i32
    %14 = arith.addi %8, %c1_i32_9 : i32
    %15 = arith.sitofp %14 : i32 to f32
    %16 = vector.broadcast %15 : f32 to vector<2x128xf32>
    %17 = arith.cmpf ole, %0, %16 : vector<2x128xf32>
    %18 = arith.andi %13, %17 : vector<2x128xi1>
    %c1_i32_10 = arith.constant 1 : i32
    %19 = arith.subi %9, %c1_i32_10 : i32
    %20 = arith.sitofp %19 : i32 to f32
    %21 = vector.broadcast %20 : f32 to vector<2x128xf32>
    %22 = arith.cmpf oge, %1, %21 : vector<2x128xf32>
    %23 = arith.andi %18, %22 : vector<2x128xi1>
    %c1_i32_11 = arith.constant 1 : i32
    %24 = arith.addi %9, %c1_i32_11 : i32
    %25 = arith.sitofp %24 : i32 to f32
    %26 = vector.broadcast %25 : f32 to vector<2x128xf32>
    %27 = arith.cmpf ole, %1, %26 : vector<2x128xf32>
    %28 = arith.andi %23, %27 : vector<2x128xi1>
    %29 = vector.broadcast %4 : f32 to vector<2x128xf32>
    %30 = arith.subf %0, %29 : vector<2x128xf32>
    %31 = vector.broadcast %7 : f32 to vector<2x128xf32>
    %32 = arith.subf %1, %31 : vector<2x128xf32>
    %33 = arith.mulf %30, %30 : vector<2x128xf32>
    %34 = arith.mulf %32, %32 : vector<2x128xf32>
    %35 = arith.addf %33, %34 : vector<2x128xf32>
    %cst_12 = arith.constant 1.00000095 : f32
    %36 = vector.broadcast %cst_12 : f32 to vector<2x128xf32>
    %37 = arith.addf %35, %36 : vector<2x128xf32>
    %38 = math.rsqrt %37 : vector<2x128xf32>
    %cst_13 = arith.constant 0.000000e+00 : f32
    %39 = vector.broadcast %cst_13 : f32 to vector<2x128xf32>
    %40 = arith.select %28, %38, %39 : vector<2x128xi1>, vector<2x128xf32>
    %c0_14 = arith.constant 0 : index
    %c2 = arith.constant 2 : index
    %41 = memref.load %arg2[%c0_14, %c2] : memref<2x8xf32, #tpu.memory_space<smem>>
    %cst_15 = arith.constant 1.000000e+00 : f32
    %cst_16 = arith.constant 1.400000e+01 : f32
    %42 = arith.maximumf %cst_15, %41 : f32
    %43 = arith.minimumf %cst_16, %42 : f32
    %c0_17 = arith.constant 0 : index
    %c3 = arith.constant 3 : index
    %44 = memref.load %arg2[%c0_17, %c3] : memref<2x8xf32, #tpu.memory_space<smem>>
    %cst_18 = arith.constant 1.000000e+00 : f32
    %cst_19 = arith.constant 1.400000e+01 : f32
    %45 = arith.maximumf %cst_18, %44 : f32
    %46 = arith.minimumf %cst_19, %45 : f32
    %47 = arith.fptosi %43 : f32 to i32
    %48 = arith.fptosi %46 : f32 to i32
    %c1_i32_20 = arith.constant 1 : i32
    %49 = arith.subi %47, %c1_i32_20 : i32
    %50 = arith.sitofp %49 : i32 to f32
    %51 = vector.broadcast %50 : f32 to vector<2x128xf32>
    %52 = arith.cmpf oge, %0, %51 : vector<2x128xf32>
    %c1_i32_21 = arith.constant 1 : i32
    %53 = arith.addi %47, %c1_i32_21 : i32
    %54 = arith.sitofp %53 : i32 to f32
    %55 = vector.broadcast %54 : f32 to vector<2x128xf32>
    %56 = arith.cmpf ole, %0, %55 : vector<2x128xf32>
    %57 = arith.andi %52, %56 : vector<2x128xi1>
    %c1_i32_22 = arith.constant 1 : i32
    %58 = arith.subi %48, %c1_i32_22 : i32
    %59 = arith.sitofp %58 : i32 to f32
    %60 = vector.broadcast %59 : f32 to vector<2x128xf32>
    %61 = arith.cmpf oge, %1, %60 : vector<2x128xf32>
    %62 = arith.andi %57, %61 : vector<2x128xi1>
    %c1_i32_23 = arith.constant 1 : i32
    %63 = arith.addi %48, %c1_i32_23 : i32
    %64 = arith.sitofp %63 : i32 to f32
    %65 = vector.broadcast %64 : f32 to vector<2x128xf32>
    %66 = arith.cmpf ole, %1, %65 : vector<2x128xf32>
    %67 = arith.andi %62, %66 : vector<2x128xi1>
    %68 = vector.broadcast %43 : f32 to vector<2x128xf32>
    %69 = arith.subf %0, %68 : vector<2x128xf32>
    %70 = vector.broadcast %46 : f32 to vector<2x128xf32>
    %71 = arith.subf %1, %70 : vector<2x128xf32>
    %72 = arith.mulf %69, %69 : vector<2x128xf32>
    %73 = arith.mulf %71, %71 : vector<2x128xf32>
    %74 = arith.addf %72, %73 : vector<2x128xf32>
    %cst_24 = arith.constant 1.00000095 : f32
    %75 = vector.broadcast %cst_24 : f32 to vector<2x128xf32>
    %76 = arith.addf %74, %75 : vector<2x128xf32>
    %77 = math.rsqrt %76 : vector<2x128xf32>
    %cst_25 = arith.constant 0.000000e+00 : f32
    %78 = vector.broadcast %cst_25 : f32 to vector<2x128xf32>
    %79 = arith.select %67, %77, %78 : vector<2x128xi1>, vector<2x128xf32>
    %80 = arith.maximumf %40, %79 : vector<2x128xf32>
    %c0_26 = arith.constant 0 : index
    %c4 = arith.constant 4 : index
    %81 = memref.load %arg2[%c0_26, %c4] : memref<2x8xf32, #tpu.memory_space<smem>>
    %cst_27 = arith.constant 1.000000e+00 : f32
    %cst_28 = arith.constant 1.400000e+01 : f32
    %82 = arith.maximumf %cst_27, %81 : f32
    %83 = arith.minimumf %cst_28, %82 : f32
    %c0_29 = arith.constant 0 : index
    %c5 = arith.constant 5 : index
    %84 = memref.load %arg2[%c0_29, %c5] : memref<2x8xf32, #tpu.memory_space<smem>>
    %cst_30 = arith.constant 1.000000e+00 : f32
    %cst_31 = arith.constant 1.400000e+01 : f32
    %85 = arith.maximumf %cst_30, %84 : f32
    %86 = arith.minimumf %cst_31, %85 : f32
    %87 = arith.fptosi %83 : f32 to i32
    %88 = arith.fptosi %86 : f32 to i32
    %c1_i32_32 = arith.constant 1 : i32
    %89 = arith.subi %87, %c1_i32_32 : i32
    %90 = arith.sitofp %89 : i32 to f32
    %91 = vector.broadcast %90 : f32 to vector<2x128xf32>
    %92 = arith.cmpf oge, %0, %91 : vector<2x128xf32>
    %c1_i32_33 = arith.constant 1 : i32
    %93 = arith.addi %87, %c1_i32_33 : i32
    %94 = arith.sitofp %93 : i32 to f32
    %95 = vector.broadcast %94 : f32 to vector<2x128xf32>
    %96 = arith.cmpf ole, %0, %95 : vector<2x128xf32>
    %97 = arith.andi %92, %96 : vector<2x128xi1>
    %c1_i32_34 = arith.constant 1 : i32
    %98 = arith.subi %88, %c1_i32_34 : i32
    %99 = arith.sitofp %98 : i32 to f32
    %100 = vector.broadcast %99 : f32 to vector<2x128xf32>
    %101 = arith.cmpf oge, %1, %100 : vector<2x128xf32>
    %102 = arith.andi %97, %101 : vector<2x128xi1>
    %c1_i32_35 = arith.constant 1 : i32
    %103 = arith.addi %88, %c1_i32_35 : i32
    %104 = arith.sitofp %103 : i32 to f32
    %105 = vector.broadcast %104 : f32 to vector<2x128xf32>
    %106 = arith.cmpf ole, %1, %105 : vector<2x128xf32>
    %107 = arith.andi %102, %106 : vector<2x128xi1>
    %108 = vector.broadcast %83 : f32 to vector<2x128xf32>
    %109 = arith.subf %0, %108 : vector<2x128xf32>
    %110 = vector.broadcast %86 : f32 to vector<2x128xf32>
    %111 = arith.subf %1, %110 : vector<2x128xf32>
    %112 = arith.mulf %109, %109 : vector<2x128xf32>
    %113 = arith.mulf %111, %111 : vector<2x128xf32>
    %114 = arith.addf %112, %113 : vector<2x128xf32>
    %cst_36 = arith.constant 1.00000095 : f32
    %115 = vector.broadcast %cst_36 : f32 to vector<2x128xf32>
    %116 = arith.addf %114, %115 : vector<2x128xf32>
    %117 = math.rsqrt %116 : vector<2x128xf32>
    %cst_37 = arith.constant 0.000000e+00 : f32
    %118 = vector.broadcast %cst_37 : f32 to vector<2x128xf32>
    %119 = arith.select %107, %117, %118 : vector<2x128xi1>, vector<2x128xf32>
    %120 = arith.maximumf %80, %119 : vector<2x128xf32>
    %c0_38 = arith.constant 0 : index
    %c6 = arith.constant 6 : index
    %121 = memref.load %arg2[%c0_38, %c6] : memref<2x8xf32, #tpu.memory_space<smem>>
    %cst_39 = arith.constant 1.000000e+00 : f32
    %cst_40 = arith.constant 1.400000e+01 : f32
    %122 = arith.maximumf %cst_39, %121 : f32
    %123 = arith.minimumf %cst_40, %122 : f32
    %c0_41 = arith.constant 0 : index
    %c7 = arith.constant 7 : index
    %124 = memref.load %arg2[%c0_41, %c7] : memref<2x8xf32, #tpu.memory_space<smem>>
    %cst_42 = arith.constant 1.000000e+00 : f32
    %cst_43 = arith.constant 1.400000e+01 : f32
    %125 = arith.maximumf %cst_42, %124 : f32
    %126 = arith.minimumf %cst_43, %125 : f32
    %127 = arith.fptosi %123 : f32 to i32
    %128 = arith.fptosi %126 : f32 to i32
    %c1_i32_44 = arith.constant 1 : i32
    %129 = arith.subi %127, %c1_i32_44 : i32
    %130 = arith.sitofp %129 : i32 to f32
    %131 = vector.broadcast %130 : f32 to vector<2x128xf32>
    %132 = arith.cmpf oge, %0, %131 : vector<2x128xf32>
    %c1_i32_45 = arith.constant 1 : i32
    %133 = arith.addi %127, %c1_i32_45 : i32
    %134 = arith.sitofp %133 : i32 to f32
    %135 = vector.broadcast %134 : f32 to vector<2x128xf32>
    %136 = arith.cmpf ole, %0, %135 : vector<2x128xf32>
    %137 = arith.andi %132, %136 : vector<2x128xi1>
    %c1_i32_46 = arith.constant 1 : i32
    %138 = arith.subi %128, %c1_i32_46 : i32
    %139 = arith.sitofp %138 : i32 to f32
    %140 = vector.broadcast %139 : f32 to vector<2x128xf32>
    %141 = arith.cmpf oge, %1, %140 : vector<2x128xf32>
    %142 = arith.andi %137, %141 : vector<2x128xi1>
    %c1_i32_47 = arith.constant 1 : i32
    %143 = arith.addi %128, %c1_i32_47 : i32
    %144 = arith.sitofp %143 : i32 to f32
    %145 = vector.broadcast %144 : f32 to vector<2x128xf32>
    %146 = arith.cmpf ole, %1, %145 : vector<2x128xf32>
    %147 = arith.andi %142, %146 : vector<2x128xi1>
    %148 = vector.broadcast %123 : f32 to vector<2x128xf32>
    %149 = arith.subf %0, %148 : vector<2x128xf32>
    %150 = vector.broadcast %126 : f32 to vector<2x128xf32>
    %151 = arith.subf %1, %150 : vector<2x128xf32>
    %152 = arith.mulf %149, %149 : vector<2x128xf32>
    %153 = arith.mulf %151, %151 : vector<2x128xf32>
    %154 = arith.addf %152, %153 : vector<2x128xf32>
    %cst_48 = arith.constant 1.00000095 : f32
    %155 = vector.broadcast %cst_48 : f32 to vector<2x128xf32>
    %156 = arith.addf %154, %155 : vector<2x128xf32>
    %157 = math.rsqrt %156 : vector<2x128xf32>
    %cst_49 = arith.constant 0.000000e+00 : f32
    %158 = vector.broadcast %cst_49 : f32 to vector<2x128xf32>
    %159 = arith.select %147, %157, %158 : vector<2x128xi1>, vector<2x128xf32>
    %160 = arith.maximumf %120, %159 : vector<2x128xf32>
    %c0_50 = arith.constant 0 : index
    %c0_51 = arith.constant 0 : index
    %c0_52 = arith.constant 0 : index
    %161 = vector.load %arg5[%c0_50, %c0_51, %c0_52] : memref<2x2x128xf32, #tpu.memory_space<vmem>>, vector<1x2x128xf32>
    %162 = vector.shape_cast %161 : vector<1x2x128xf32> to vector<2x128xf32>
    %163 = vector.shape_cast %160 : vector<2x128xf32> to vector<1x2x128xf32>
    tpu.vector_store %arg5[%c0_50, %c0_51, %c0_52], %163 {strides = array<i32>} : memref<2x2x128xf32, #tpu.memory_space<vmem>>, vector<1x2x128xf32>,
    %c1_53 = arith.constant 1 : index
    %c0_54 = arith.constant 0 : index
    %164 = memref.load %arg2[%c1_53, %c0_54] : memref<2x8xf32, #tpu.memory_space<smem>>
    %cst_55 = arith.constant 1.000000e+00 : f32
    %cst_56 = arith.constant 1.400000e+01 : f32
    %165 = arith.maximumf %cst_55, %164 : f32
    %166 = arith.minimumf %cst_56, %165 : f32
    %c1_57 = arith.constant 1 : index
    %c1_58 = arith.constant 1 : index
    %167 = memref.load %arg2[%c1_57, %c1_58] : memref<2x8xf32, #tpu.memory_space<smem>>
    %cst_59 = arith.constant 1.000000e+00 : f32
    %cst_60 = arith.constant 1.400000e+01 : f32
    %168 = arith.maximumf %cst_59, %167 : f32
    %169 = arith.minimumf %cst_60, %168 : f32
    %170 = arith.fptosi %166 : f32 to i32
    %171 = arith.fptosi %169 : f32 to i32
    %c1_i32_61 = arith.constant 1 : i32
    %172 = arith.subi %170, %c1_i32_61 : i32
    %173 = arith.sitofp %172 : i32 to f32
    %174 = vector.broadcast %173 : f32 to vector<2x128xf32>
    %175 = arith.cmpf oge, %0, %174 : vector<2x128xf32>
    %c1_i32_62 = arith.constant 1 : i32
    %176 = arith.addi %170, %c1_i32_62 : i32
    %177 = arith.sitofp %176 : i32 to f32
    %178 = vector.broadcast %177 : f32 to vector<2x128xf32>
    %179 = arith.cmpf ole, %0, %178 : vector<2x128xf32>
    %180 = arith.andi %175, %179 : vector<2x128xi1>
    %c1_i32_63 = arith.constant 1 : i32
    %181 = arith.subi %171, %c1_i32_63 : i32
    %182 = arith.sitofp %181 : i32 to f32
    %183 = vector.broadcast %182 : f32 to vector<2x128xf32>
    %184 = arith.cmpf oge, %1, %183 : vector<2x128xf32>
    %185 = arith.andi %180, %184 : vector<2x128xi1>
    %c1_i32_64 = arith.constant 1 : i32
    %186 = arith.addi %171, %c1_i32_64 : i32
    %187 = arith.sitofp %186 : i32 to f32
    %188 = vector.broadcast %187 : f32 to vector<2x128xf32>
    %189 = arith.cmpf ole, %1, %188 : vector<2x128xf32>
    %190 = arith.andi %185, %189 : vector<2x128xi1>
    %191 = vector.broadcast %166 : f32 to vector<2x128xf32>
    %192 = arith.subf %0, %191 : vector<2x128xf32>
    %193 = vector.broadcast %169 : f32 to vector<2x128xf32>
    %194 = arith.subf %1, %193 : vector<2x128xf32>
    %195 = arith.mulf %192, %192 : vector<2x128xf32>
    %196 = arith.mulf %194, %194 : vector<2x128xf32>
    %197 = arith.addf %195, %196 : vector<2x128xf32>
    %cst_65 = arith.constant 1.00000095 : f32
    %198 = vector.broadcast %cst_65 : f32 to vector<2x128xf32>
    %199 = arith.addf %197, %198 : vector<2x128xf32>
    %200 = math.rsqrt %199 : vector<2x128xf32>
    %cst_66 = arith.constant 0.000000e+00 : f32
    %201 = vector.broadcast %cst_66 : f32 to vector<2x128xf32>
    %202 = arith.select %190, %200, %201 : vector<2x128xi1>, vector<2x128xf32>
    %c1_67 = arith.constant 1 : index
    %c2_68 = arith.constant 2 : index
    %203 = memref.load %arg2[%c1_67, %c2_68] : memref<2x8xf32, #tpu.memory_space<smem>>
    %cst_69 = arith.constant 1.000000e+00 : f32
    %cst_70 = arith.constant 1.400000e+01 : f32
    %204 = arith.maximumf %cst_69, %203 : f32
    %205 = arith.minimumf %cst_70, %204 : f32
    %c1_71 = arith.constant 1 : index
    %c3_72 = arith.constant 3 : index
    %206 = memref.load %arg2[%c1_71, %c3_72] : memref<2x8xf32, #tpu.memory_space<smem>>
    %cst_73 = arith.constant 1.000000e+00 : f32
    %cst_74 = arith.constant 1.400000e+01 : f32
    %207 = arith.maximumf %cst_73, %206 : f32
    %208 = arith.minimumf %cst_74, %207 : f32
    %209 = arith.fptosi %205 : f32 to i32
    %210 = arith.fptosi %208 : f32 to i32
    %c1_i32_75 = arith.constant 1 : i32
    %211 = arith.subi %209, %c1_i32_75 : i32
    %212 = arith.sitofp %211 : i32 to f32
    %213 = vector.broadcast %212 : f32 to vector<2x128xf32>
    %214 = arith.cmpf oge, %0, %213 : vector<2x128xf32>
    %c1_i32_76 = arith.constant 1 : i32
    %215 = arith.addi %209, %c1_i32_76 : i32
    %216 = arith.sitofp %215 : i32 to f32
    %217 = vector.broadcast %216 : f32 to vector<2x128xf32>
    %218 = arith.cmpf ole, %0, %217 : vector<2x128xf32>
    %219 = arith.andi %214, %218 : vector<2x128xi1>
    %c1_i32_77 = arith.constant 1 : i32
    %220 = arith.subi %210, %c1_i32_77 : i32
    %221 = arith.sitofp %220 : i32 to f32
    %222 = vector.broadcast %221 : f32 to vector<2x128xf32>
    %223 = arith.cmpf oge, %1, %222 : vector<2x128xf32>
    %224 = arith.andi %219, %223 : vector<2x128xi1>
    %c1_i32_78 = arith.constant 1 : i32
    %225 = arith.addi %210, %c1_i32_78 : i32
    %226 = arith.sitofp %225 : i32 to f32
    %227 = vector.broadcast %226 : f32 to vector<2x128xf32>
    %228 = arith.cmpf ole, %1, %227 : vector<2x128xf32>
    %229 = arith.andi %224, %228 : vector<2x128xi1>
    %230 = vector.broadcast %205 : f32 to vector<2x128xf32>
    %231 = arith.subf %0, %230 : vector<2x128xf32>
    %232 = vector.broadcast %208 : f32 to vector<2x128xf32>
    %233 = arith.subf %1, %232 : vector<2x128xf32>
    %234 = arith.mulf %231, %231 : vector<2x128xf32>
    %235 = arith.mulf %233, %233 : vector<2x128xf32>
    %236 = arith.addf %234, %235 : vector<2x128xf32>
    %cst_79 = arith.constant 1.00000095 : f32
    %237 = vector.broadcast %cst_79 : f32 to vector<2x128xf32>
    %238 = arith.addf %236, %237 : vector<2x128xf32>
    %239 = math.rsqrt %238 : vector<2x128xf32>
    %cst_80 = arith.constant 0.000000e+00 : f32
    %240 = vector.broadcast %cst_80 : f32 to vector<2x128xf32>
    %241 = arith.select %229, %239, %240 : vector<2x128xi1>, vector<2x128xf32>
    %242 = arith.maximumf %202, %241 : vector<2x128xf32>
    %c1_81 = arith.constant 1 : index
    %c4_82 = arith.constant 4 : index
    %243 = memref.load %arg2[%c1_81, %c4_82] : memref<2x8xf32, #tpu.memory_space<smem>>
    %cst_83 = arith.constant 1.000000e+00 : f32
    %cst_84 = arith.constant 1.400000e+01 : f32
    %244 = arith.maximumf %cst_83, %243 : f32
    %245 = arith.minimumf %cst_84, %244 : f32
    %c1_85 = arith.constant 1 : index
    %c5_86 = arith.constant 5 : index
    %246 = memref.load %arg2[%c1_85, %c5_86] : memref<2x8xf32, #tpu.memory_space<smem>>
    %cst_87 = arith.constant 1.000000e+00 : f32
    %cst_88 = arith.constant 1.400000e+01 : f32
    %247 = arith.maximumf %cst_87, %246 : f32
    %248 = arith.minimumf %cst_88, %247 : f32
    %249 = arith.fptosi %245 : f32 to i32
    %250 = arith.fptosi %248 : f32 to i32
    %c1_i32_89 = arith.constant 1 : i32
    %251 = arith.subi %249, %c1_i32_89 : i32
    %252 = arith.sitofp %251 : i32 to f32
    %253 = vector.broadcast %252 : f32 to vector<2x128xf32>
    %254 = arith.cmpf oge, %0, %253 : vector<2x128xf32>
    %c1_i32_90 = arith.constant 1 : i32
    %255 = arith.addi %249, %c1_i32_90 : i32
    %256 = arith.sitofp %255 : i32 to f32
    %257 = vector.broadcast %256 : f32 to vector<2x128xf32>
    %258 = arith.cmpf ole, %0, %257 : vector<2x128xf32>
    %259 = arith.andi %254, %258 : vector<2x128xi1>
    %c1_i32_91 = arith.constant 1 : i32
    %260 = arith.subi %250, %c1_i32_91 : i32
    %261 = arith.sitofp %260 : i32 to f32
    %262 = vector.broadcast %261 : f32 to vector<2x128xf32>
    %263 = arith.cmpf oge, %1, %262 : vector<2x128xf32>
    %264 = arith.andi %259, %263 : vector<2x128xi1>
    %c1_i32_92 = arith.constant 1 : i32
    %265 = arith.addi %250, %c1_i32_92 : i32
    %266 = arith.sitofp %265 : i32 to f32
    %267 = vector.broadcast %266 : f32 to vector<2x128xf32>
    %268 = arith.cmpf ole, %1, %267 : vector<2x128xf32>
    %269 = arith.andi %264, %268 : vector<2x128xi1>
    %270 = vector.broadcast %245 : f32 to vector<2x128xf32>
    %271 = arith.subf %0, %270 : vector<2x128xf32>
    %272 = vector.broadcast %248 : f32 to vector<2x128xf32>
    %273 = arith.subf %1, %272 : vector<2x128xf32>
    %274 = arith.mulf %271, %271 : vector<2x128xf32>
    %275 = arith.mulf %273, %273 : vector<2x128xf32>
    %276 = arith.addf %274, %275 : vector<2x128xf32>
    %cst_93 = arith.constant 1.00000095 : f32
    %277 = vector.broadcast %cst_93 : f32 to vector<2x128xf32>
    %278 = arith.addf %276, %277 : vector<2x128xf32>
    %279 = math.rsqrt %278 : vector<2x128xf32>
    %cst_94 = arith.constant 0.000000e+00 : f32
    %280 = vector.broadcast %cst_94 : f32 to vector<2x128xf32>
    %281 = arith.select %269, %279, %280 : vector<2x128xi1>, vector<2x128xf32>
    %282 = arith.maximumf %242, %281 : vector<2x128xf32>
    %c1_95 = arith.constant 1 : index
    %c6_96 = arith.constant 6 : index
    %283 = memref.load %arg2[%c1_95, %c6_96] : memref<2x8xf32, #tpu.memory_space<smem>>
    %cst_97 = arith.constant 1.000000e+00 : f32
    %cst_98 = arith.constant 1.400000e+01 : f32
    %284 = arith.maximumf %cst_97, %283 : f32
    %285 = arith.minimumf %cst_98, %284 : f32
    %c1_99 = arith.constant 1 : index
    %c7_100 = arith.constant 7 : index
    %286 = memref.load %arg2[%c1_99, %c7_100] : memref<2x8xf32, #tpu.memory_space<smem>>
    %cst_101 = arith.constant 1.000000e+00 : f32
    %cst_102 = arith.constant 1.400000e+01 : f32
    %287 = arith.maximumf %cst_101, %286 : f32
    %288 = arith.minimumf %cst_102, %287 : f32
    %289 = arith.fptosi %285 : f32 to i32
    %290 = arith.fptosi %288 : f32 to i32
    %c1_i32_103 = arith.constant 1 : i32
    %291 = arith.subi %289, %c1_i32_103 : i32
    %292 = arith.sitofp %291 : i32 to f32
    %293 = vector.broadcast %292 : f32 to vector<2x128xf32>
    %294 = arith.cmpf oge, %0, %293 : vector<2x128xf32>
    %c1_i32_104 = arith.constant 1 : i32
    %295 = arith.addi %289, %c1_i32_104 : i32
    %296 = arith.sitofp %295 : i32 to f32
    %297 = vector.broadcast %296 : f32 to vector<2x128xf32>
    %298 = arith.cmpf ole, %0, %297 : vector<2x128xf32>
    %299 = arith.andi %294, %298 : vector<2x128xi1>
    %c1_i32_105 = arith.constant 1 : i32
    %300 = arith.subi %290, %c1_i32_105 : i32
    %301 = arith.sitofp %300 : i32 to f32
    %302 = vector.broadcast %301 : f32 to vector<2x128xf32>
    %303 = arith.cmpf oge, %1, %302 : vector<2x128xf32>
    %304 = arith.andi %299, %303 : vector<2x128xi1>
    %c1_i32_106 = arith.constant 1 : i32
    %305 = arith.addi %290, %c1_i32_106 : i32
    %306 = arith.sitofp %305 : i32 to f32
    %307 = vector.broadcast %306 : f32 to vector<2x128xf32>
    %308 = arith.cmpf ole, %1, %307 : vector<2x128xf32>
    %309 = arith.andi %304, %308 : vector<2x128xi1>
    %310 = vector.broadcast %285 : f32 to vector<2x128xf32>
    %311 = arith.subf %0, %310 : vector<2x128xf32>
    %312 = vector.broadcast %288 : f32 to vector<2x128xf32>
    %313 = arith.subf %1, %312 : vector<2x128xf32>
    %314 = arith.mulf %311, %311 : vector<2x128xf32>
    %315 = arith.mulf %313, %313 : vector<2x128xf32>
    %316 = arith.addf %314, %315 : vector<2x128xf32>
    %cst_107 = arith.constant 1.00000095 : f32
    %317 = vector.broadcast %cst_107 : f32 to vector<2x128xf32>
    %318 = arith.addf %316, %317 : vector<2x128xf32>
    %319 = math.rsqrt %318 : vector<2x128xf32>
    %cst_108 = arith.constant 0.000000e+00 : f32
    %320 = vector.broadcast %cst_108 : f32 to vector<2x128xf32>
    %321 = arith.select %309, %319, %320 : vector<2x128xi1>, vector<2x128xf32>
    %322 = arith.maximumf %282, %321 : vector<2x128xf32>
    %c1_109 = arith.constant 1 : index
    %c0_110 = arith.constant 0 : index
    %c0_111 = arith.constant 0 : index
    %323 = vector.load %arg5[%c1_109, %c0_110, %c0_111] : memref<2x2x128xf32, #tpu.memory_space<vmem>>, vector<1x2x128xf32>
    %324 = vector.shape_cast %323 : vector<1x2x128xf32> to vector<2x128xf32>
    %325 = vector.shape_cast %322 : vector<2x128xf32> to vector<1x2x128xf32>
    tpu.vector_store %arg5[%c1_109, %c0_110, %c0_111], %325 {strides = array<i32>} : memref<2x2x128xf32, #tpu.memory_space<vmem>>, vector<1x2x128xf32>,
    return
  }
  func.func @transform_0(%arg0: i32, %arg1: i32) -> (i32, i32) {
    %c0_i32 = arith.constant 0 : i32
    %c0_i32_0 = arith.constant 0 : i32
    return %arg0, %c0_i32 : i32, i32
  }
  func.func @transform_1(%arg0: i32, %arg1: i32) -> (i32, i32) {
    %c0_i32 = arith.constant 0 : i32
    %c0_i32_0 = arith.constant 0 : i32
    return %arg1, %c0_i32 : i32, i32
  }
  func.func @transform_2(%arg0: i32, %arg1: i32) -> (i32, i32) {
    %c0_i32 = arith.constant 0 : i32
    %c0_i32_0 = arith.constant 0 : i32
    return %arg1, %c0_i32 : i32, i32
  }
  func.func @transform_3(%arg0: i32, %arg1: i32) -> (i32, i32, i32) {
    %c0_i32 = arith.constant 0 : i32
    %c0_i32_0 = arith.constant 0 : i32
    return %arg0, %arg1, %c0_i32 : i32, i32, i32
  }
}

</mosaic_0001>

<llo_original>
// kernel: tpu_custom_call.1
$region0: #{tpu_custom_call.1}
  #allocation0 [shape = 'u32[]', space=smem, size = 0x4, offset = 0x4, fixed_abs, tag = 'smem constant byte address 0x4 - core index']
  #allocation1 [shape = 'u32[144,128]{1,0:T(1,128)}', space=vmem, size = 0x12000, scoped, tag = 'internal scratch']
  %s0 = inlined_call_operand.hbm [shape: f32[2,8], index: 0, kind: input, shape index: {}]
  %s1 = inlined_call_operand.vmem [shape: f32[2,128], index: 1, kind: input, shape index: {}]
  %s2 = inlined_call_operand.vmem [shape: f32[2,128], index: 2, kind: input, shape index: {}]
  %s3 = inlined_call_operand.hbm [shape: f32[2,2,128], index: 3, kind: output, shape index: {}]
  %s4 = sld [smem:[#allocation0]]
  $region26: #{tpu_custom_call.1} parent=0
    _
  %s6 = ssub.s32 1, %s4
  %s7 = scalar_select 0, %s6, %s4
  $region1: #{tpu_custom_call.1} parent=0
    #allocation2 [shape = 'u8[1024]{0}', space=smem, size = 0x400, scoped, tag = 'input window, operand 0, single buffered']
    #allocation3 [shape = 's32[1]{0}', space=sflag, size = 0x4, scoped, tag = 'scoped memory for tpu_custom_call.1']
    #allocation4 [shape = 's32[1]{0}', space=sflag, size = 0x4, scoped, tag = 'scoped memory for tpu_custom_call.1']
    #allocation5 [shape = 'u8[2048]{0}', space=vmem, size = 0x800, scoped, tag = 'output window, operand 0, single buffered']
    %8 = vsyncpa [#allocation4], 0
    %9 = vsyncpa [#allocation3], 0
    // Predicated region
    $region2: #{tpu_custom_call.1} parent=1 // pred_check
      _
    $region3: #{tpu_custom_call.1} parent=1 // pred_check_branch
      %11 = sbr.rel (0) target = $region5
    $region4: #{tpu_custom_call.1} parent=1 // pred_region
      %s13 = ssub.s32 32, 32
      %14 = vsyncadd [#allocation4], %s13
      %17 = dma.hbm_to_smem %s0, 32, [#allocation2], [#allocation4]
    $region5: #{tpu_custom_call.1} parent=1 // pred_fallthru
      _
    // Predicated region
    $region6: #{tpu_custom_call.1} parent=1 // pred_check
      _
    $region7: #{tpu_custom_call.1} parent=1 // pred_check_branch
      %19 = sbr.rel (0) target = $region9
    $region8: #{tpu_custom_call.1} parent=1 // pred_region
      _
    $region9: #{tpu_custom_call.1} parent=1 // pred_fallthru
      _
    // Predicated region
    $region10: #{tpu_custom_call.1} parent=1 // pred_check
      _
    $region11: #{tpu_custom_call.1} parent=1 // pred_check_branch
      %21 = sbr.rel (0) target = $region13
    $region12: #{tpu_custom_call.1} parent=1 // pred_region
      _
    $region13: #{tpu_custom_call.1} parent=1 // pred_fallthru
      _
    // Predicated region
    $region14: #{tpu_custom_call.1} parent=1 // pred_check
      _
    $region15: #{tpu_custom_call.1} parent=1 // pred_check_branch
      %23 = sbr.rel (0) target = $region17
    $region16: #{tpu_custom_call.1} parent=1 // pred_region
      %24 = dma.done [#allocation4], 32
    $region17: #{tpu_custom_call.1} parent=1 // pred_fallthru
      _
    %25 = sfence
    %v26 = vld [vmem:[%s1] sm:$0x3]
    %v27 = vld [vmem:[%s2] sm:$0x3]
    %s28 = sld [smem:[#allocation2]]
    %s29 = smax.f32 %s28, 1.0
    %s30 = smin.f32 %s29, 14.0
    %s31 = sld [smem:[#allocation2 + $0x1]]
    %s32 = smax.f32 %s31, 1.0
    %s33 = smin.f32 %s32, 14.0
    %s34 = scvt.f32.s32.to.zero.pseudo %s30
    %s35 = scvt.f32.s32.to.zero.pseudo %s33
    %s36 = ssub.s32 %s34, 1
    %s37 = scvt.s32.f32 %s36
    %v38 = vstv %s37
    %vm39 = vcmp.ge.f32.partialorder %v26, %v38
    %s40 = sadd.s32 %s34, 1
    %s41 = scvt.s32.f32 %s40
    %v42 = vstv %s41
    %vm43 = vcmp.le.f32.partialorder %v26, %v42
    %vm44 = vmand %vm39, %vm43
    %s45 = ssub.s32 %s35, 1
    %s46 = scvt.s32.f32 %s45
    %v47 = vstv %s46
    %vm48 = vcmp.ge.f32.partialorder %v27, %v47
    %vm49 = vmand %vm44, %vm48
    %s50 = sadd.s32 %s35, 1
    %s51 = scvt.s32.f32 %s50
    %v52 = vstv %s51
    %vm53 = vcmp.le.f32.partialorder %v27, %v52
    %vm54 = vmand %vm49, %vm53
    %v55 = vstv %s30
    %v56 = vsub.f32 %v26, %v55
    %v57 = vstv %s33
    %v58 = vsub.f32 %v27, %v57
    %v59 = vmul.f32 %v56, %v56
    %v60 = vmul.f32 %v58, %v58
    %v61 = vadd.f32 %v59, %v60
    %v62 = vadd.f32 %v61, 1.000001
    %v63 = vrsqrt.pop %v62
    %v64 = vsel %vm54, %v63, 0.0
    %s65 = sld [smem:[#allocation2 + $0x2]]
    %s66 = smax.f32 %s65, 1.0
    %s67 = smin.f32 %s66, 14.0
    %s68 = sld [smem:[#allocation2 + $0x3]]
    %s69 = smax.f32 %s68, 1.0
    %s70 = smin.f32 %s69, 14.0
    %s71 = scvt.f32.s32.to.zero.pseudo %s67
    %s72 = scvt.f32.s32.to.zero.pseudo %s70
    %s73 = ssub.s32 %s71, 1
    %s74 = scvt.s32.f32 %s73
    %v75 = vstv %s74
    %vm76 = vcmp.ge.f32.partialorder %v26, %v75
    %s77 = sadd.s32 %s71, 1
    %s78 = scvt.s32.f32 %s77
    %v79 = vstv %s78
    %vm80 = vcmp.le.f32.partialorder %v26, %v79
    %vm81 = vmand %vm76, %vm80
    %s82 = ssub.s32 %s72, 1
    %s83 = scvt.s32.f32 %s82
    %v84 = vstv %s83
    %vm85 = vcmp.ge.f32.partialorder %v27, %v84
    %vm86 = vmand %vm81, %vm85
    %s87 = sadd.s32 %s72, 1
    %s88 = scvt.s32.f32 %s87
    %v89 = vstv %s88
    %vm90 = vcmp.le.f32.partialorder %v27, %v89
    %vm91 = vmand %vm86, %vm90
    %v92 = vstv %s67
    %v93 = vsub.f32 %v26, %v92
    %v94 = vstv %s70
    %v95 = vsub.f32 %v27, %v94
    %v96 = vmul.f32 %v93, %v93
    %v97 = vmul.f32 %v95, %v95
    %v98 = vadd.f32 %v96, %v97
    %v99 = vadd.f32 %v98, 1.000001
    %v100 = vrsqrt.pop %v99
    %v101 = vsel %vm91, %v100, 0.0
    %v102 = vmax.f32 %v64, %v101
    %s103 = sld [smem:[#allocation2 + $0x4]]
    %s104 = smax.f32 %s103, 1.0
    %s105 = smin.f32 %s104, 14.0
    %s106 = sld [smem:[#allocation2 + $0x5]]
    %s107 = smax.f32 %s106, 1.0
    %s108 = smin.f32 %s107, 14.0
    %s109 = scvt.f32.s32.to.zero.pseudo %s105
    %s110 = scvt.f32.s32.to.zero.pseudo %s108
    %s111 = ssub.s32 %s109, 1
    %s112 = scvt.s32.f32 %s111
    %v113 = vstv %s112
    %vm114 = vcmp.ge.f32.partialorder %v26, %v113
    %s115 = sadd.s32 %s109, 1
    %s116 = scvt.s32.f32 %s115
    %v117 = vstv %s116
    %vm118 = vcmp.le.f32.partialorder %v26, %v117
    %vm119 = vmand %vm114, %vm118
    %s120 = ssub.s32 %s110, 1
    %s121 = scvt.s32.f32 %s120
    %v122 = vstv %s121
    %vm123 = vcmp.ge.f32.partialorder %v27, %v122
    %vm124 = vmand %vm119, %vm123
    %s125 = sadd.s32 %s110, 1
    %s126 = scvt.s32.f32 %s125
    %v127 = vstv %s126
    %vm128 = vcmp.le.f32.partialorder %v27, %v127
    %vm129 = vmand %vm124, %vm128
    %v130 = vstv %s105
    %v131 = vsub.f32 %v26, %v130
    %v132 = vstv %s108
    %v133 = vsub.f32 %v27, %v132
    %v134 = vmul.f32 %v131, %v131
    %v135 = vmul.f32 %v133, %v133
    %v136 = vadd.f32 %v134, %v135
    %v137 = vadd.f32 %v136, 1.000001
    %v138 = vrsqrt.pop %v137
    %v139 = vsel %vm129, %v138, 0.0
    %v140 = vmax.f32 %v102, %v139
    %s141 = sld [smem:[#allocation2 + $0x6]]
    %s142 = smax.f32 %s141, 1.0
    %s143 = smin.f32 %s142, 14.0
    %s144 = sld [smem:[#allocation2 + $0x7]]
    %s145 = smax.f32 %s144, 1.0
    %s146 = smin.f32 %s145, 14.0
    %s147 = scvt.f32.s32.to.zero.pseudo %s143
    %s148 = scvt.f32.s32.to.zero.pseudo %s146
    %s149 = ssub.s32 %s147, 1
    %s150 = scvt.s32.f32 %s149
    %v151 = vstv %s150
    %vm152 = vcmp.ge.f32.partialorder %v26, %v151
    %s153 = sadd.s32 %s147, 1
    %s154 = scvt.s32.f32 %s153
    %v155 = vstv %s154
    %vm156 = vcmp.le.f32.partialorder %v26, %v155
    %vm157 = vmand %vm152, %vm156
    %s158 = ssub.s32 %s148, 1
    %s159 = scvt.s32.f32 %s158
    %v160 = vstv %s159
    %vm161 = vcmp.ge.f32.partialorder %v27, %v160
    %vm162 = vmand %vm157, %vm161
    %s163 = sadd.s32 %s148, 1
    %s164 = scvt.s32.f32 %s163
    %v165 = vstv %s164
    %vm166 = vcmp.le.f32.partialorder %v27, %v165
    %vm167 = vmand %vm162, %vm166
    %v168 = vstv %s143
    %v169 = vsub.f32 %v26, %v168
    %v170 = vstv %s146
    %v171 = vsub.f32 %v27, %v170
    %v172 = vmul.f32 %v169, %v169
    %v173 = vmul.f32 %v171, %v171
    %v174 = vadd.f32 %v172, %v173
    %v175 = vadd.f32 %v174, 1.000001
    %v176 = vrsqrt.pop %v175
    %v177 = vsel %vm167, %v176, 0.0
    %v178 = vmax.f32 %v140, %v177
    %179 = vst [vmem:[#allocation5] sm:$0x3] %v178
    %s180 = sld [smem:[#allocation2 + $0x80]]
    %s181 = smax.f32 %s180, 1.0
    %s182 = smin.f32 %s181, 14.0
    %s183 = sld [smem:[#allocation2 + $0x81]]
    %s184 = smax.f32 %s183, 1.0
    %s185 = smin.f32 %s184, 14.0
    %s186 = scvt.f32.s32.to.zero.pseudo %s182
    %s187 = scvt.f32.s32.to.zero.pseudo %s185
    %s188 = ssub.s32 %s186, 1
    %s189 = scvt.s32.f32 %s188
    %v190 = vstv %s189
    %vm191 = vcmp.ge.f32.partialorder %v26, %v190
    %s192 = sadd.s32 %s186, 1
    %s193 = scvt.s32.f32 %s192
    %v194 = vstv %s193
    %vm195 = vcmp.le.f32.partialorder %v26, %v194
    %vm196 = vmand %vm191, %vm195
    %s197 = ssub.s32 %s187, 1
    %s198 = scvt.s32.f32 %s197
    %v199 = vstv %s198
    %vm200 = vcmp.ge.f32.partialorder %v27, %v199
    %vm201 = vmand %vm196, %vm200
    %s202 = sadd.s32 %s187, 1
    %s203 = scvt.s32.f32 %s202
    %v204 = vstv %s203
    %vm205 = vcmp.le.f32.partialorder %v27, %v204
    %vm206 = vmand %vm201, %vm205
    %v207 = vstv %s182
    %v208 = vsub.f32 %v26, %v207
    %v209 = vstv %s185
    %v210 = vsub.f32 %v27, %v209
    %v211 = vmul.f32 %v208, %v208
    %v212 = vmul.f32 %v210, %v210
    %v213 = vadd.f32 %v211, %v212
    %v214 = vadd.f32 %v213, 1.000001
    %v215 = vrsqrt.pop %v214
    %v216 = vsel %vm206, %v215, 0.0
    %s217 = sld [smem:[#allocation2 + $0x82]]
    %s218 = smax.f32 %s217, 1.0
    %s219 = smin.f32 %s218, 14.0
    %s220 = sld [smem:[#allocation2 + $0x83]]
    %s221 = smax.f32 %s220, 1.0
    %s222 = smin.f32 %s221, 14.0
    %s223 = scvt.f32.s32.to.zero.pseudo %s219
    %s224 = scvt.f32.s32.to.zero.pseudo %s222
    %s225 = ssub.s32 %s223, 1
    %s226 = scvt.s32.f32 %s225
    %v227 = vstv %s226
    %vm228 = vcmp.ge.f32.partialorder %v26, %v227
    %s229 = sadd.s32 %s223, 1
    %s230 = scvt.s32.f32 %s229
    %v231 = vstv %s230
    %vm232 = vcmp.le.f32.partialorder %v26, %v231
    %vm233 = vmand %vm228, %vm232
    %s234 = ssub.s32 %s224, 1
    %s235 = scvt.s32.f32 %s234
    %v236 = vstv %s235
    %vm237 = vcmp.ge.f32.partialorder %v27, %v236
    %vm238 = vmand %vm233, %vm237
    %s239 = sadd.s32 %s224, 1
    %s240 = scvt.s32.f32 %s239
    %v241 = vstv %s240
    %vm242 = vcmp.le.f32.partialorder %v27, %v241
    %vm243 = vmand %vm238, %vm242
    %v244 = vstv %s219
    %v245 = vsub.f32 %v26, %v244
    %v246 = vstv %s222
    %v247 = vsub.f32 %v27, %v246
    %v248 = vmul.f32 %v245, %v245
    %v249 = vmul.f32 %v247, %v247
    %v250 = vadd.f32 %v248, %v249
    %v251 = vadd.f32 %v250, 1.000001
    %v252 = vrsqrt.pop %v251
    %v253 = vsel %vm243, %v252, 0.0
    %v254 = vmax.f32 %v216, %v253
    %s255 = sld [smem:[#allocation2 + $0x84]]
    %s256 = smax.f32 %s255, 1.0
    %s257 = smin.f32 %s256, 14.0
    %s258 = sld [smem:[#allocation2 + $0x85]]
    %s259 = smax.f32 %s258, 1.0
    %s260 = smin.f32 %s259, 14.0
    %s261 = scvt.f32.s32.to.zero.pseudo %s257
    %s262 = scvt.f32.s32.to.zero.pseudo %s260
    %s263 = ssub.s32 %s261, 1
    %s264 = scvt.s32.f32 %s263
    %v265 = vstv %s264
    %vm266 = vcmp.ge.f32.partialorder %v26, %v265
    %s267 = sadd.s32 %s261, 1
    %s268 = scvt.s32.f32 %s267
    %v269 = vstv %s268
    %vm270 = vcmp.le.f32.partialorder %v26, %v269
    %vm271 = vmand %vm266, %vm270
    %s272 = ssub.s32 %s262, 1
    %s273 = scvt.s32.f32 %s272
    %v274 = vstv %s273
    %vm275 = vcmp.ge.f32.partialorder %v27, %v274
    %vm276 = vmand %vm271, %vm275
    %s277 = sadd.s32 %s262, 1
    %s278 = scvt.s32.f32 %s277
    %v279 = vstv %s278
    %vm280 = vcmp.le.f32.partialorder %v27, %v279
    %vm281 = vmand %vm276, %vm280
    %v282 = vstv %s257
    %v283 = vsub.f32 %v26, %v282
    %v284 = vstv %s260
    %v285 = vsub.f32 %v27, %v284
    %v286 = vmul.f32 %v283, %v283
    %v287 = vmul.f32 %v285, %v285
    %v288 = vadd.f32 %v286, %v287
    %v289 = vadd.f32 %v288, 1.000001
    %v290 = vrsqrt.pop %v289
    %v291 = vsel %vm281, %v290, 0.0
    %v292 = vmax.f32 %v254, %v291
    %s293 = sld [smem:[#allocation2 + $0x86]]
    %s294 = smax.f32 %s293, 1.0
    %s295 = smin.f32 %s294, 14.0
    %s296 = sld [smem:[#allocation2 + $0x87]]
    %s297 = smax.f32 %s296, 1.0
    %s298 = smin.f32 %s297, 14.0
    %s299 = scvt.f32.s32.to.zero.pseudo %s295
    %s300 = scvt.f32.s32.to.zero.pseudo %s298
    %s301 = ssub.s32 %s299, 1
    %s302 = scvt.s32.f32 %s301
    %v303 = vstv %s302
    %vm304 = vcmp.ge.f32.partialorder %v26, %v303
    %s305 = sadd.s32 %s299, 1
    %s306 = scvt.s32.f32 %s305
    %v307 = vstv %s306
    %vm308 = vcmp.le.f32.partialorder %v26, %v307
    %vm309 = vmand %vm304, %vm308
    %s310 = ssub.s32 %s300, 1
    %s311 = scvt.s32.f32 %s310
    %v312 = vstv %s311
    %vm313 = vcmp.ge.f32.partialorder %v27, %v312
    %vm314 = vmand %vm309, %vm313
    %s315 = sadd.s32 %s300, 1
    %s316 = scvt.s32.f32 %s315
    %v317 = vstv %s316
    %vm318 = vcmp.le.f32.partialorder %v27, %v317
    %vm319 = vmand %vm314, %vm318
    %v320 = vstv %s295
    %v321 = vsub.f32 %v26, %v320
    %v322 = vstv %s298
    %v323 = vsub.f32 %v27, %v322
    %v324 = vmul.f32 %v321, %v321
    %v325 = vmul.f32 %v323, %v323
    %v326 = vadd.f32 %v324, %v325
    %v327 = vadd.f32 %v326, 1.000001
    %v328 = vrsqrt.pop %v327
    %v329 = vsel %vm319, %v328, 0.0
    %v330 = vmax.f32 %v292, %v329
    %s331 = scalar_lea.vmem [#allocation5], 2
    %332 = vst [vmem:[%s331] sm:$0x3] %v330
    // Predicated region
    $region18: #{tpu_custom_call.1} parent=1 // pred_check
      _
    $region19: #{tpu_custom_call.1} parent=1 // pred_check_branch
      %334 = sbr.rel (0) target = $region21
    $region20: #{tpu_custom_call.1} parent=1 // pred_region
      %s336 = ssub.s32 64, 64
      %337 = vsyncadd [#allocation3], %s336
      %s338 = sshll.u32 [#allocation5], 4
      %s339 = int_to_ptr.vmem [resolvable:$true] %s338
      %344 = dma.vmem_to_hbm [thread:$0]  %s339, 64, %s3, [#allocation3], 32, 32, 2
    $region21: #{tpu_custom_call.1} parent=1 // pred_fallthru
      _
    // Predicated region
    $region22: #{tpu_custom_call.1} parent=1 // pred_check
      _
    $region23: #{tpu_custom_call.1} parent=1 // pred_check_branch
      %346 = sbr.rel (0) target = $region25
    $region24: #{tpu_custom_call.1} parent=1 // pred_region
      %347 = dma.done [#allocation3], 64
    $region25: #{tpu_custom_call.1} parent=1 // pred_fallthru
      _
    %348 = vsyncpa [#allocation3], 1
    %349 = vsyncpa [#allocation4], 1

</llo_original>
